<compile_context>
chip_gen: v6e
topology: v6e:2x2x1
jax: 0.10.0
libtpu: 0.0.40
codegen_flags: <defaults>
</compile_context>

<pallas_src>
import jax
import jax.numpy as jnp
from jax import lax
from jax.experimental import pallas as pl
from jax.experimental.pallas import tpu as pltpu


def _round_up(x, m):
    return ((x + m - 1) // m) * m


def lr_kernel(x_ref, w_ref, b_ref, o_ref):
    # x_ref: (TB, K)  w_ref: (O, K)  b_ref: (1, O)  o_ref: (TB, O)
    acc = lax.dot_general(
        x_ref[...],
        w_ref[...],
        dimension_numbers=(((1,), (1,)), ((), ())),  # contract K with K (trans_b)
        preferred_element_type=jnp.float32,
    )
    o_ref[...] = (acc + b_ref[...]).astype(o_ref.dtype)


def lr_forward(x, weight, bias, *, tb=4096):
    """Equivalent of torch.nn.Linear(200, 2): y = x @ weight.T + bias.

    x:      (B, 200) float32
    weight: (2, 200) float32  (PyTorch layout: (out_features, in_features))
    bias:   (2,)     float32
    """
    B, K = x.shape
    O = weight.shape[0]

    # --- batch tile --------------------------------------------------------
    # Big tile (multiple of 8 sublanes) to amortize per-step overhead, but
    # clamped to ~B/2 so the grid has at least 2 steps for megacore sharding
    # on v7x whenever the batch is big enough.
    half = max(8, _round_up(pl.cdiv(B, 2), 8))
    TB = max(8, min(_round_up(tb, 8), half))
    grid = (pl.cdiv(B, TB),)  # partial last block handled by Pallas masking

    # --- VMEM budget (count lane padding, not raw dims) ---------------------
    itemsize = 4
    K_pad = _round_up(K, 128)   # 200 -> 256 lanes
    O_pad = _round_up(O, 128)   # 2   -> 128 lanes (lane-sparse out, budgeted)
    needed = (2 * TB * K_pad * itemsize          # x, double-buffered
              + 2 * TB * O_pad * itemsize        # out, double-buffered
              + 8 * K_pad * itemsize             # weight (sublane-padded)
              + 8 * O_pad * itemsize)            # bias
    vmem_limit = min(max(int(needed * 1.25) + (2 << 20), 8 << 20), 48 << 20)

    b2d = bias.reshape(1, O)

    out = pl.pallas_call(
        lr_kernel,
        out_shape=jax.ShapeDtypeStruct((B, O), x.dtype),
        grid_spec=pl.GridSpec(
            grid=grid,
            in_specs=[
                # x: tiled over batch.  (Optional: pipeline_mode=pl.Buffered(3)
                # once the TB/VMEM budget is settled.)
                pl.BlockSpec((TB, K), lambda i: (i, 0)),
                pl.BlockSpec((O, K), lambda i: (0, 0)),    # weight: VMEM-resident
                pl.BlockSpec((1, O), lambda i: (0, 0)),    # bias: VMEM-resident
            ],
            out_specs=pl.BlockSpec((TB, O), lambda i: (i, 0)),
        ),
        compiler_params=pltpu.CompilerParams(
            dimension_semantics=("parallel",),
            vmem_limit_bytes=vmem_limit,
        ),
        cost_estimate=pl.CostEstimate(
            flops=2 * B * K * O,
            transcendentals=0,
            bytes_accessed=itemsize * (B * K + K * O + B * O),
        ),
    )(x, weight, b2d)

    return out


def reference_forward(x, weight, bias):
    return x @ weight.T + bias


if __name__ == "__main__":
    key = jax.random.PRNGKey(0)
    kx, kw, kb = jax.random.split(key, 3)

    B, IN, OUT = 100, 200, 2  # ragged batch: exercises partial-last-block masking

    # Deterministic init mimicking nn.Linear's uniform(-1/sqrt(IN), 1/sqrt(IN))
    bound = 1.0 / jnp.sqrt(jnp.float32(IN))
    weight = jax.random.uniform(kw, (OUT, IN), jnp.float32, -bound, bound)
    bias = jax.random.uniform(kb, (OUT,), jnp.float32, -bound, bound)

    x = jax.random.normal(kx, (B, IN), jnp.float32)

    # Default tb=4096 clamps to TB=56 here -> grid=(2,), non-divisible batch:
    # tests both the megacore clamp and the masked partial last block.
    y = lr_forward(x, weight, bias)
    y = jax.block_until_ready(y)
    y_ref = reference_forward(x, weight, bias)
    assert y.shape == (B, OUT)
    assert jnp.allclose(y, y_ref, atol=1e-5, rtol=1e-5)

    # Also exercise a multi-step, evenly divisible grid with a small tile.
    x2 = jax.random.normal(kx, (128, IN), jnp.float32)
    y2 = jax.block_until_ready(lr_forward(x2, weight, bias, tb=32))
    assert jnp.allclose(y2, reference_forward(x2, weight, bias), atol=1e-5, rtol=1e-5)

    print("KERNEL_OK")
</pallas_src>

<mosaic_0001>
module attributes {stable_mosaic.version = 11 : i64} {
  func.func @lr_kernel(%arg0: i32, %arg1: memref<56x200xf32, #tpu.memory_space<vmem>>, %arg2: memref<2x200xf32, #tpu.memory_space<vmem>>, %arg3: memref<1x2xf32, #tpu.memory_space<vmem>>, %arg4: memref<56x2xf32, #tpu.memory_space<vmem>>) attributes {dimension_semantics = [#tpu.dimension_semantics<parallel>], iteration_bounds = array<i64: 2>, scalar_prefetch = 0 : i64, scratch_operands = 0 : i64, tpu.core_type = #tpu.core_type<tc>, window_params = [{transform_indices = @transform_0, window_bounds = array<i64: 56, 200>}, {pipeline_mode = #tpu.pipeline_mode<synchronous>, transform_indices = @transform_1, window_bounds = array<i64: 2, 200>}, {pipeline_mode = #tpu.pipeline_mode<synchronous>, transform_indices = @transform_2, window_bounds = array<i64: 1, 2>}, {transform_indices = @transform_3, window_bounds = array<i64: 56, 2>}]} {
    %c0 = arith.constant 0 : index
    %c0_0 = arith.constant 0 : index
    %0 = vector.load %arg1[%c0, %c0_0] : memref<56x200xf32, #tpu.memory_space<vmem>>, vector<56x200xf32>
    %c0_1 = arith.constant 0 : index
    %c0_2 = arith.constant 0 : index
    %1 = vector.load %arg2[%c0_1, %c0_2] : memref<2x200xf32, #tpu.memory_space<vmem>>, vector<2x200xf32>
    %cst = arith.constant dense<0.000000e+00> : vector<56x2xf32>
    %2 = tpu.matmul %0, %1, %cst {dimension_numbers = #tpu.dot_dimension_numbers<[1], [1], [0], [0], [0, 0, 1, 0], [], []>} : vector<56x200xf32>, vector<2x200xf32>, vector<56x2xf32> -> vector<56x2xf32>
    %c0_3 = arith.constant 0 : index
    %c0_4 = arith.constant 0 : index
    %3 = vector.load %arg3[%c0_3, %c0_4] : memref<1x2xf32, #tpu.memory_space<vmem>>, vector<1x2xf32>
    %4 = vector.broadcast %3 : vector<1x2xf32> to vector<56x2xf32>
    %5 = arith.addf %2, %4 : vector<56x2xf32>
    %c0_5 = arith.constant 0 : index
    %c0_6 = arith.constant 0 : index
    %6 = vector.load %arg4[%c0_5, %c0_6] : memref<56x2xf32, #tpu.memory_space<vmem>>, vector<56x2xf32>
    tpu.vector_store %arg4[%c0_5, %c0_6], %5 {strides = array<i32>} : memref<56x2xf32, #tpu.memory_space<vmem>>, vector<56x2xf32>,
    return
  }
  func.func @transform_0(%arg0: i32) -> (i32, i32) {
    %c0_i32 = arith.constant 0 : i32
    %c0_i32_0 = arith.constant 0 : i32
    return %arg0, %c0_i32 : i32, i32
  }
  func.func @transform_1(%arg0: i32) -> (i32, i32) {
    %c0_i32 = arith.constant 0 : i32
    %c0_i32_0 = arith.constant 0 : i32
    %c0_i32_1 = arith.constant 0 : i32
    return %c0_i32, %c0_i32_0 : i32, i32
  }
  func.func @transform_2(%arg0: i32) -> (i32, i32) {
    %c0_i32 = arith.constant 0 : i32
    %c0_i32_0 = arith.constant 0 : i32
    %c0_i32_1 = arith.constant 0 : i32
    return %c0_i32, %c0_i32_0 : i32, i32
  }
  func.func @transform_3(%arg0: i32) -> (i32, i32) {
    %c0_i32 = arith.constant 0 : i32
    %c0_i32_0 = arith.constant 0 : i32
    return %arg0, %c0_i32 : i32, i32
  }
}

</mosaic_0001>

<llo_original>
// kernel: tpu_custom_call.1
$region0: #{tpu_custom_call.1}
  #allocation0 [shape = 'u32[]', space=smem, size = 0x4, offset = 0x4, fixed_abs, tag = 'smem constant byte address 0x4 - core index']
  #allocation1 [shape = 'u32[144,128]{1,0:T(1,128)}', space=vmem, size = 0x12000, scoped, tag = 'internal scratch']
  %s0 = inlined_call_operand.vmem [shape: f32[100,200], index: 0, kind: input, shape index: {}]
  %s1 = inlined_call_operand.vmem [shape: f32[2,200], index: 1, kind: input, shape index: {}]
  %s2 = inlined_call_operand.vmem [shape: f32[1,2], index: 2, kind: input, shape index: {}]
  %s3 = inlined_call_operand.vmem [shape: f32[100,2], index: 3, kind: output, shape index: {}]
  %s4 = sld [smem:[#allocation0]]
  $region93: #{tpu_custom_call.1} parent=0
    _
  %s6 = ssub.s32 1, %s4
  %s7 = scalar_select 0, %s6, %s4
  $region1: #{tpu_custom_call.1} parent=0
    #allocation2 [shape = 'u8[57344]{0}', space=vmem, size = 0xe000, scoped, tag = 'output window, operand 0']
    loop: start=0, step=1, limit=4
    $region2: #{tpu_custom_call.1} parent=1 // loop_pre_header
      _
    $region3: #{tpu_custom_call.1} parent=1 // loop_header
      %s9 = sphi 0, %s13
      %p10 = scmp.ge.s32.totalorder %s9, 4
      %s19 = sphi 0, %s21
      %s22 = sphi 0, %s19
      %s23 = sphi 0, %s22
      %s39 = sphi 0, %s23
      %s43 = sphi 0, %s43
      %s45 = sphi 0, %s43
      %s46 = sphi 0, %s45
      %s60 = sphi 0, %s46
      %s64 = sphi 0, %s64
      %s66 = sphi 0, %s64
      %s67 = sphi 0, %s66
      %s81 = sphi 0, %s67
      %s87 = sphi 0, %s89
      %s90 = sphi 0, %s87
      %s91 = sphi 0, %s90
      %s107 = sphi 0, %s91
    $region4: #{tpu_custom_call.1} parent=1 // loop_header_branch
      %12 = sbr.rel (%p10) target = $region8
    $region5: #{tpu_custom_call.1} parent=1 // loop_body
      %s14 = ssub.s32 %s9, 1
      %s15 = ssub.s32 %s9, 2
      %s16 = sadd.s32 %s9, 1
      %s17 = ssub.s32 %s9, %s16
      %p18 = scmp.eq.s32.totalorder %s17, 0
      %s20 = sadd.s32 %s19, 1
      %s21 = scalar_select %p18, %s19, %s20
      %p24 = pneg %p18
      %p25 = scmp.eq.s32.totalorder %s9, 1
      %p26 = por %p24, %p25
      %p27 = scmp.ne.s32.totalorder %s19, %s22
      %p28 = scmp.eq.s32.totalorder %s9, 0
      %p29 = por %p27, %p28
      %p30 = scmp.ne.s32.totalorder %s19, %s22
      %p31 = scmp.eq.s32.totalorder %s14, 1
      %p32 = por %p30, %p31
      %p33 = scmp.ne.s32.totalorder %s22, %s23
      %p34 = scmp.eq.s32.totalorder %s14, 0
      %p35 = por %p33, %p34
      %p36 = scmp.ne.s32.totalorder %s22, %s23
      %p37 = scmp.eq.s32.totalorder %s15, 1
      %p38 = por %p36, %p37
      %p40 = scmp.ne.s32.totalorder %s23, %s39
      %p41 = scmp.eq.s32.totalorder %s15, 0
      %p42 = por %p40, %p41
      %s44 = sadd.s32 %s43, 1
      %p47 = scmp.eq.s32.totalorder %s9, 1
      %p48 = scmp.ne.s32.totalorder %s43, %s45
      %p49 = scmp.eq.s32.totalorder %s9, 0
      %p50 = por %p48, %p49
      %p51 = scmp.ne.s32.totalorder %s43, %s45
      %p52 = scmp.eq.s32.totalorder %s14, 1
      %p53 = por %p51, %p52
      %p54 = scmp.ne.s32.totalorder %s45, %s46
      %p55 = scmp.eq.s32.totalorder %s14, 0
      %p56 = por %p54, %p55
      %p57 = scmp.ne.s32.totalorder %s45, %s46
      %p58 = scmp.eq.s32.totalorder %s15, 1
      %p59 = por %p57, %p58
      %p61 = scmp.ne.s32.totalorder %s46, %s60
      %p62 = scmp.eq.s32.totalorder %s15, 0
      %p63 = por %p61, %p62
      %s65 = sadd.s32 %s64, 1
      %p68 = scmp.eq.s32.totalorder %s9, 1
      %p69 = scmp.ne.s32.totalorder %s64, %s66
      %p70 = scmp.eq.s32.totalorder %s9, 0
      %p71 = por %p69, %p70
      %p72 = scmp.ne.s32.totalorder %s64, %s66
      %p73 = scmp.eq.s32.totalorder %s14, 1
      %p74 = por %p72, %p73
      %p75 = scmp.ne.s32.totalorder %s66, %s67
      %p76 = scmp.eq.s32.totalorder %s14, 0
      %p77 = por %p75, %p76
      %p78 = scmp.ne.s32.totalorder %s66, %s67
      %p79 = scmp.eq.s32.totalorder %s15, 1
      %p80 = por %p78, %p79
      %p82 = scmp.ne.s32.totalorder %s67, %s81
      %p83 = scmp.eq.s32.totalorder %s15, 0
      %p84 = por %p82, %p83
      %s85 = ssub.s32 %s9, %s16
      %p86 = scmp.eq.s32.totalorder %s85, 0
      %s88 = sadd.s32 %s87, 1
      %s89 = scalar_select %p86, %s87, %s88
      %p92 = pneg %p86
      %p93 = scmp.eq.s32.totalorder %s9, 1
      %p94 = por %p92, %p93
      %p95 = scmp.ne.s32.totalorder %s87, %s90
      %p96 = scmp.eq.s32.totalorder %s9, 0
      %p97 = por %p95, %p96
      %p98 = scmp.ne.s32.totalorder %s87, %s90
      %p99 = scmp.eq.s32.totalorder %s14, 1
      %p100 = por %p98, %p99
      %p101 = scmp.ne.s32.totalorder %s90, %s91
      %p102 = scmp.eq.s32.totalorder %s14, 0
      %p103 = por %p101, %p102
      %p104 = scmp.ne.s32.totalorder %s90, %s91
      %p105 = scmp.eq.s32.totalorder %s15, 1
      %p106 = por %p104, %p105
      %p108 = scmp.ne.s32.totalorder %s91, %s107
      %p109 = scmp.eq.s32.totalorder %s15, 0
      %p110 = por %p108, %p109
      %p111 = scmp.le.s32.totalorder 1, %s9
      %p112 = scmp.lt.s32.totalorder %s9, 3
      %p113 = pnand %p111, %p112
      %p114 = pneg %p113
      // Predicated region
      $region9: #{tpu_custom_call.1} parent=5 // pred_check
        _
      $region10: #{tpu_custom_call.1} parent=5 // pred_check_branch
        %116 = sbr.rel (%p113) target = $region12
      $region11: #{tpu_custom_call.1} parent=5 // pred_region
        %s117 = ssub.s32 %s9, 1
        // Predicated region
        $region13: #{tpu_custom_call.1} parent=11 // pred_check
          %p118 = pneg %p56
        $region14: #{tpu_custom_call.1} parent=11 // pred_check_branch
          %120 = sbr.rel (%p118) target = $region16
        $region15: #{tpu_custom_call.1} parent=11 // pred_region
          _
        $region16: #{tpu_custom_call.1} parent=11 // pred_fallthru
          _
        // Predicated region
        $region17: #{tpu_custom_call.1} parent=11 // pred_check
          %p121 = pneg %p77
        $region18: #{tpu_custom_call.1} parent=11 // pred_check_branch
          %123 = sbr.rel (%p121) target = $region20
        $region19: #{tpu_custom_call.1} parent=11 // pred_region
          _
        $region20: #{tpu_custom_call.1} parent=11 // pred_fallthru
          _
      $region12: #{tpu_custom_call.1} parent=5 // pred_fallthru
        _
      %p124 = scmp.lt.s32.totalorder %s9, 2
      // Predicated region
      $region21: #{tpu_custom_call.1} parent=5 // pred_check
        %p125 = pneg %p124
      $region22: #{tpu_custom_call.1} parent=5 // pred_check_branch
        %127 = sbr.rel (%p125) target = $region24
      $region23: #{tpu_custom_call.1} parent=5 // pred_region
        // Predicated region
        $region25: #{tpu_custom_call.1} parent=23 // pred_check
          %p128 = pneg %p29
        $region26: #{tpu_custom_call.1} parent=23 // pred_check_branch
          %130 = sbr.rel (%p128) target = $region28
        $region27: #{tpu_custom_call.1} parent=23 // pred_region
          %s131 = smul.u32 7, %s9
          %s132 = ssub.s32 13, %s131
          %p133 = scmp.lt.s32.totalorder %s132, 7
          %s134 = scalar_select %p133, %s132, 7
          %s135 = smul.u32 128, %s134
          %s136 = smul.u32 %s135, 2
          %p137 = scmp.lt.s32.totalorder %s131, 12
          %s138 = scalar_select %p137, %s131, 12
          %s139 = smul.addr %s138, 2
          %s140 = smul.addr %s139, 8
          %s141 = scalar_lea.vmem %s0, %s140
          %s142 = smul.u32 7, %s9
          %s143 = ssub.s32 13, %s142
          %p144 = scmp.lt.s32.totalorder %s143, 7
          %s145 = scalar_select %p144, %s143, 7
          %s146 = smul.u32 128, %s145
          %s147 = smul.u32 %s146, 2
        $region28: #{tpu_custom_call.1} parent=23 // pred_fallthru
          _
      $region24: #{tpu_custom_call.1} parent=5 // pred_fallthru
        _
      %p148 = scmp.le.s32.totalorder 1, %s9
      %p149 = scmp.lt.s32.totalorder %s9, 3
      %p150 = pnand %p148, %p149
      %p151 = pneg %p150
      // Predicated region
      $region29: #{tpu_custom_call.1} parent=5 // pred_check
        _
      $region30: #{tpu_custom_call.1} parent=5 // pred_check_branch
        %153 = sbr.rel (%p150) target = $region32
      $region31: #{tpu_custom_call.1} parent=5 // pred_region
        %s154 = ssub.s32 %s9, 1
        %s155 = smul.u32 7, %s14
        %s156 = ssub.s32 13, %s155
        %p157 = scmp.lt.s32.totalorder %s156, 7
        %s158 = scalar_select %p157, %s156, 7
        %s159 = smul.u32 128, %s158
        %s160 = smul.u32 %s159, 2
        %p161 = scmp.lt.s32.totalorder %s155, 12
        %s162 = scalar_select %p161, %s155, 12
        %s163 = smul.addr %s162, 2
        %s164 = smul.addr %s163, 8
        %s165 = scalar_lea.vmem %s0, %s164
        %p166 = pneg %p35
        %p167 = pneg %p32
        %p168 = pneg %p56
        %p169 = pneg %p53
        %p170 = pneg %p77
        %p171 = pneg %p74
        %p172 = pneg %p103
        %p173 = pneg %p100
        %s174 = sand.u32 %s90, 1
        %s175 = sand.u32 %s90, 1
        %s176 = smul.addr %s175, 56
        %s177 = scalar_lea.vmem [#allocation2], %s176
        %s178 = smul.u32 7, %s14
        %s179 = ssub.s32 13, %s178
        %p180 = scmp.lt.s32.totalorder %s179, 7
        %s181 = scalar_select %p180, %s179, 7
        %s182 = smul.u32 128, %s181
        %s183 = smul.u32 %s182, 2
        %p184 = scmp.lt.s32.totalorder %s178, 12
        %s185 = scalar_select %p184, %s178, 12
        %s186 = smul.addr %s185, 2
        %s187 = smul.addr %s186, 8
        %s188 = scalar_lea.vmem %s0, %s187
        %s189 = smul.u32 7, %s14
        %s190 = ssub.s32 13, %s189
        %p191 = scmp.lt.s32.totalorder %s190, 7
        %s192 = scalar_select %p191, %s190, 7
        %s193 = smul.u32 128, %s192
        %s194 = smul.u32 %s193, 2
        %s195 = smul.u32 7, %s14
        %s196 = ssub.s32 13, %s195
        %p197 = scmp.lt.s32.totalorder %s196, 7
        %s198 = scalar_select %p197, %s196, 7
        %s199 = smul.u32 128, %s198
        %v200 = vld [vmem:[%s188] sm:$0xff]
        %v201 = vld [vmem:[%s188 + $0x8] sm:$0xff]
        %v202 = vld [vmem:[%s188 + $0x10] sm:$0xff]
        %v203 = vld [vmem:[%s188 + $0x18] sm:$0xff]
        %v204 = vld [vmem:[%s188 + $0x20] sm:$0xff]
        %v205 = vld [vmem:[%s188 + $0x28] sm:$0xff]
        %v206 = vld [vmem:[%s188 + $0x30] sm:$0xff]
        %v207 = vld [vmem:[%s188 + $0x38] sm:$0xff]
        %v208 = vld [vmem:[%s188 + $0x40] sm:$0xff]
        %v209 = vld [vmem:[%s188 + $0x48] sm:$0xff]
        %v210 = vld [vmem:[%s188 + $0x50] sm:$0xff]
        %v211 = vld [vmem:[%s188 + $0x58] sm:$0xff]
        %v212 = vld [vmem:[%s188 + $0x60] sm:$0xff]
        %v213 = vld [vmem:[%s188 + $0x68] sm:$0xff]
        %v214 = vld [vmem:[%s1] sm:$0xf]
        %v215 = vld [vmem:[%s2] sm:$0x1]
        %v217 = vlaneseq
        %v218 = vshrl.u32 %v217, 7
        %v219 = vsub.s32 0, %v218
        %v220 = vrot.slane %v215, %v219
        %v224 = vunpack.c.l.s4 1983009808
        %v225 = vunpack.c.0.s8 %v224
        %v226 = vlaneseq
        %v227 = vshrl.u32 %v226, 7
        %v228 = vsub.s32 %v225, %v227
        %v229 = vrot.slane %v214, %v228
        %v230 = vcombine.high %v229, %v229
        %vm232 = vcmask 588800
        %v234 = vsel %vm232, %v201, 0
        %v237 = vsel %vm232, %v203, 0
        %v240 = vsel %vm232, %v205, 0
        %v243 = vsel %vm232, %v207, 0
        %v246 = vsel %vm232, %v209, 0
        %v249 = vsel %vm232, %v211, 0
        %v252 = vsel %vm232, %v213, 0
        %v254 = vsel %vm232, %v230, 0
        %256 = vmatprep.subr.mxu0 0.0
        %257 = vmatpush1.xpose.msra.mxu0 0.0
        %258 = vmatprep.subr.mxu0 0.0
        %259 = vmatpush1.xpose.msra.mxu0 0.0
        %260 = vmatprep.subr.mxu0 0.0
        %261 = vmatpush1.xpose.msra.mxu0 0.0
        %262 = vmatprep.subr.mxu0 0.0
        %263 = vmatpush1.xpose.msra.mxu0 0.0
        %264 = vmatprep.subr.mxu0 0.0
        %265 = vmatpush1.xpose.msra.mxu0 0.0
        %266 = vmatprep.subr.mxu0 0.0
        %267 = vmatpush1.xpose.msra.mxu0 0.0
        %268 = vmatprep.subr.mxu0 0.0
        %269 = vmatpush1.xpose.msra.mxu0 0.0
        %270 = vmatprep.subr.mxu0 0.0
        %271 = vmatpush1.xpose.msra.mxu0 0.0
        %272 = vmatprep.subr.mxu0 0.0
        %273 = vmatpush1.xpose.msra.mxu0 0.0
        %274 = vmatprep.subr.mxu0 0.0
        %275 = vmatpush1.xpose.msra.mxu0 0.0
        %276 = vmatprep.subr.mxu0 0.0
        %277 = vmatpush1.xpose.msra.mxu0 0.0
        %278 = vmatprep.subr.mxu0 0.0
        %279 = vmatpush1.xpose.msra.mxu0 0.0
        %280 = vmatprep.subr.mxu0 0.0
        %281 = vmatpush1.xpose.msra.mxu0 0.0
        %282 = vmatprep.subr.mxu0 0.0
        %283 = vmatpush1.xpose.msra.mxu0 0.0
        %284 = vmatprep.subr.mxu0 0.0
        %285 = vmatpush1.xpose.msra.mxu0 0.0
        %286 = vmatprep.subr.mxu0 %v254
        %287 = vmatpush1.xpose.msra.mxu0 %v229
        %288 = vmatprep.subr.mxu0 0.0
        %289 = vmatpush2.xpose.msra.mxu0 0.0
        %290 = vmatprep.subr.mxu0 0.0
        %291 = vmatpush2.xpose.msra.mxu0 0.0
        %292 = vmatprep.subr.mxu0 0.0
        %293 = vmatpush2.xpose.msra.mxu0 0.0
        %294 = vmatprep.subr.mxu0 0.0
        %295 = vmatpush2.xpose.msra.mxu0 0.0
        %296 = vmatprep.subr.mxu0 0.0
        %297 = vmatpush2.xpose.msra.mxu0 0.0
        %298 = vmatprep.subr.mxu0 0.0
        %299 = vmatpush2.xpose.msra.mxu0 0.0
        %300 = vmatprep.subr.mxu0 0.0
        %301 = vmatpush2.xpose.msra.mxu0 0.0
        %302 = vmatprep.subr.mxu0 0.0
        %303 = vmatpush2.xpose.msra.mxu0 0.0
        %304 = vmatprep.subr.mxu0 0.0
        %305 = vmatpush2.xpose.msra.mxu0 0.0
        %306 = vmatprep.subr.mxu0 0.0
        %307 = vmatpush2.xpose.msra.mxu0 0.0
        %308 = vmatprep.subr.mxu0 0.0
        %309 = vmatpush2.xpose.msra.mxu0 0.0
        %310 = vmatprep.subr.mxu0 0.0
        %311 = vmatpush2.xpose.msra.mxu0 0.0
        %312 = vmatprep.subr.mxu0 0.0
        %313 = vmatpush2.xpose.msra.mxu0 0.0
        %314 = vmatprep.subr.mxu0 0.0
        %315 = vmatpush2.xpose.msra.mxu0 0.0
        %316 = vmatprep.subr.mxu0 0.0
        %317 = vmatpush2.xpose.msra.mxu0 0.0
        %318 = vmatprep.subr.mxu0 0.0
        %319 = vmatpush2.xpose.msra.mxu0 0.0
        %320 = vmatprep.mubr.f32.mxu0 %v234
        %321 = vmatmul.mubr.f32.gmra.mxu0 %v200
        %v322 = vpop.f32.mrf.mxu0
        %v323 = vadd.f32 %v220, %v322
        %v324 = vpop.f32.mrf.mxu0
        %325 = vmatprep.mubr.f32.mxu0 %v237
        %326 = vmatmul.mubr.f32.gmra.mxu0 %v202
        %v327 = vpop.f32.mrf.mxu0
        %v328 = vadd.f32 %v220, %v327
        %v329 = vpop.f32.mrf.mxu0
        %330 = vmatprep.mubr.f32.mxu0 %v240
        %331 = vmatmul.mubr.f32.gmra.mxu0 %v204
        %v332 = vpop.f32.mrf.mxu0
        %v333 = vadd.f32 %v220, %v332
        %v334 = vpop.f32.mrf.mxu0
        %335 = vmatprep.mubr.f32.mxu0 %v243
        %336 = vmatmul.mubr.f32.gmra.mxu0 %v206
        %v337 = vpop.f32.mrf.mxu0
        %v338 = vadd.f32 %v220, %v337
        %v339 = vpop.f32.mrf.mxu0
        %340 = vmatprep.mubr.f32.mxu0 %v246
        %341 = vmatmul.mubr.f32.gmra.mxu0 %v208
        %v342 = vpop.f32.mrf.mxu0
        %v343 = vadd.f32 %v220, %v342
        %v344 = vpop.f32.mrf.mxu0
        %345 = vmatprep.mubr.f32.mxu0 %v249
        %346 = vmatmul.mubr.f32.gmra.mxu0 %v210
        %v347 = vpop.f32.mrf.mxu0
        %v348 = vadd.f32 %v220, %v347
        %v349 = vpop.f32.mrf.mxu0
        %350 = vmatprep.mubr.f32.mxu0 %v252
        %351 = vmatmul.mubr.f32.gmra.mxu0 %v212
        %v352 = vpop.f32.mrf.mxu0
        %v353 = vadd.f32 %v220, %v352
        %v354 = vpop.f32.mrf.mxu0
        %355 = vdwg.mxu0
        %vm356 = vcmask 15360
        %357 = vst.msk [vmem:[%s177] sm:$0xff] %vm356, %v323
        %358 = vst.msk [vmem:[%s177 + $0x8] sm:$0xff] %vm356, %v328
        %359 = vst.msk [vmem:[%s177 + $0x10] sm:$0xff] %vm356, %v333
        %360 = vst.msk [vmem:[%s177 + $0x18] sm:$0xff] %vm356, %v338
        %361 = vst.msk [vmem:[%s177 + $0x20] sm:$0xff] %vm356, %v343
        %362 = vst.msk [vmem:[%s177 + $0x28] sm:$0xff] %vm356, %v348
        %363 = vst.msk [vmem:[%s177 + $0x30] sm:$0xff] %vm356, %v353
        %s364 = sand.u32 %s90, 1
        %s365 = sand.u32 %s90, 1
        %s366 = smul.addr %s365, 56
        %s367 = scalar_lea.vmem [#allocation2], %s366
        // Predicated region
        $region33: #{tpu_custom_call.1} parent=31 // pred_check
          %p368 = pneg %p100
        $region34: #{tpu_custom_call.1} parent=31 // pred_check_branch
          %370 = sbr.rel (%p368) target = $region36
        $region35: #{tpu_custom_call.1} parent=31 // pred_region
          %s371 = smul.u32 7, %s14
          %s372 = ssub.s32 13, %s371
          %p373 = scmp.lt.s32.totalorder %s372, 7
          %s374 = scalar_select %p373, %s372, 7
          %s375 = smul.u32 128, %s374
          %p376 = scmp.ne.s32.totalorder 0, %s375
          %s377 = smul.addr %s371, 8
          %s378 = scalar_lea.vmem %s3, %s377
          // Predicated region
          $region37: #{tpu_custom_call.1} parent=35 // pred_check
            %p379 = pneg %p376
          $region38: #{tpu_custom_call.1} parent=35 // pred_check_branch
            %381 = sbr.rel (%p379) target = $region40
          $region39: #{tpu_custom_call.1} parent=35 // pred_region
            // Predicated region
            $region41: #{tpu_custom_call.1} parent=39 // pred_check
              _
            $region42: #{tpu_custom_call.1} parent=39 // pred_check_branch
              %383 = sbr.rel (0) target = $region44
            $region43: #{tpu_custom_call.1} parent=39 // pred_region
              // Predicated region
              $region63: #{tpu_custom_call.1} parent=43 // pred_check
                _
              $region64: #{tpu_custom_call.1} parent=43 // pred_check_branch
                %446 = sbr.rel (0) target = $region66
              $region65: #{tpu_custom_call.1} parent=43 // pred_region
                %s447 = sdiv.u32.pop %s374, 7
                %s448 = srem.u32.pop %s374, 7
                // While loop
                $region67: #{tpu_custom_call.1} parent=65 // loop_pre_header
                  _
                $region68: #{tpu_custom_call.1} parent=65 // loop_header
                  %s450 = sphi 0, %s452
                  %p451 = scmp.ge.s32.totalorder %s450, %s447
                  %s455 = sphi 0, %s474
                  %s456 = sphi %s367, %s477
                  %s457 = sphi %s378, %s478
                $region69: #{tpu_custom_call.1} parent=65 // loop_header_branch
                  %454 = sbr.rel (%p451) target = $region73
                $region70: #{tpu_custom_call.1} parent=65 // loop_body
                  %v458 = vld [vmem:[%s456] sm:$0xff]
                  %459 = vst [vmem:[%s457] sm:$0xff] %v458
                  %v460 = vld [vmem:[%s456 + $0x8] sm:$0xff]
                  %461 = vst [vmem:[%s457 + $0x8] sm:$0xff] %v460
                  %v462 = vld [vmem:[%s456 + $0x10] sm:$0xff]
                  %463 = vst [vmem:[%s457 + $0x10] sm:$0xff] %v462
                  %v464 = vld [vmem:[%s456 + $0x18] sm:$0xff]
                  %465 = vst [vmem:[%s457 + $0x18] sm:$0xff] %v464
                  %v466 = vld [vmem:[%s456 + $0x20] sm:$0xff]
                  %467 = vst [vmem:[%s457 + $0x20] sm:$0xff] %v466
                  %v468 = vld [vmem:[%s456 + $0x28] sm:$0xff]
                  %469 = vst [vmem:[%s457 + $0x28] sm:$0xff] %v468
                  %v470 = vld [vmem:[%s456 + $0x30] sm:$0xff]
                  %471 = vst [vmem:[%s457 + $0x30] sm:$0xff] %v470
                  %s472 = sadd.s32 1, %s455
                  %p473 = scmp.ge.s32.totalorder %s472, %s447
                  %s474 = scalar_select %p473, 0, %s472
                  %s475 = smul.u32 %s474, 56
                  %s476 = smul.u32 %s474, 56
                  %s477 = scalar_lea.vmem %s367, %s475 [#allocation2]
                  %s478 = scalar_lea.vmem %s378, %s476
                $region71: #{tpu_custom_call.1} parent=65 // loop_footer
                  %s452 = sadd.s32 %s450, 1
                $region72: #{tpu_custom_call.1} parent=65 // loop_footer_branch
                  %449 = sbr.rel target = $region68
                $region73: #{tpu_custom_call.1} parent=65 // loop_exit
                  _
                %s479 = sdiv.u32.pop %s374, 7
                %s480 = srem.u32.pop %s374, 7
                %s481 = smul.u32 %s479, 7
                %s482 = smul.u32 8, %s481
                %s483 = scalar_lea.vmem %s367, %s482 [#allocation2]
                %s484 = smul.u32 8, %s481
                %s485 = scalar_lea.vmem %s378, %s484
                // While loop
                $region74: #{tpu_custom_call.1} parent=65 // loop_pre_header
                  _
                $region75: #{tpu_custom_call.1} parent=65 // loop_header
                  %s487 = sphi 0, %s489
                  %p488 = scmp.ge.s32.totalorder %s487, %s480
                  %s492 = sphi 0, %s499
                  %s493 = sphi %s483, %s502
                  %s494 = sphi %s485, %s503
                $region76: #{tpu_custom_call.1} parent=65 // loop_header_branch
                  %491 = sbr.rel (%p488) target = $region80
                $region77: #{tpu_custom_call.1} parent=65 // loop_body
                  %v495 = vld [vmem:[%s493] sm:$0xff]
                  %496 = vst [vmem:[%s494] sm:$0xff] %v495
                  %s497 = sadd.s32 1, %s492
                  %p498 = scmp.ge.s32.totalorder %s497, %s480
                  %s499 = scalar_select %p498, 0, %s497
                  %s500 = smul.u32 %s499, 8
                  %s501 = smul.u32 %s499, 8
                  %s502 = scalar_lea.vmem %s483, %s500 [#allocation2]
                  %s503 = scalar_lea.vmem %s485, %s501
                $region78: #{tpu_custom_call.1} parent=65 // loop_footer
                  %s489 = sadd.s32 %s487, 1
                $region79: #{tpu_custom_call.1} parent=65 // loop_footer_branch
                  %486 = sbr.rel target = $region75
                $region80: #{tpu_custom_call.1} parent=65 // loop_exit
                  _
              $region66: #{tpu_custom_call.1} parent=43 // pred_fallthru
                _
              // Predicated region
              $region81: #{tpu_custom_call.1} parent=43 // pred_check
                _
              $region82: #{tpu_custom_call.1} parent=43 // pred_check_branch
                %505 = sbr.rel target = $region84
              $region83: #{tpu_custom_call.1} parent=43 // pred_region
                _
              $region84: #{tpu_custom_call.1} parent=43 // pred_fallthru
                _
            $region44: #{tpu_custom_call.1} parent=39 // pred_fallthru
              _
            // Predicated region
            $region45: #{tpu_custom_call.1} parent=39 // pred_check
              _
            $region46: #{tpu_custom_call.1} parent=39 // pred_check_branch
              %385 = sbr.rel target = $region48
            $region47: #{tpu_custom_call.1} parent=39 // pred_region
              %s387 = ssub.s32 256, 1
              %s388 = sdiv.u32.pop %s374, 7
              %s389 = srem.u32.pop %s374, 7
              // While loop
              $region49: #{tpu_custom_call.1} parent=47 // loop_pre_header
                _
              $region50: #{tpu_custom_call.1} parent=47 // loop_header
                %s391 = sphi 0, %s393
                %p392 = scmp.ge.s32.totalorder %s391, %s388
                %s396 = sphi 0, %s415
                %s397 = sphi %s367, %s418
                %s398 = sphi %s378, %s419
              $region51: #{tpu_custom_call.1} parent=47 // loop_header_branch
                %395 = sbr.rel (%p392) target = $region55
              $region52: #{tpu_custom_call.1} parent=47 // loop_body
                %v399 = vld [vmem:[%s397] sm:%s387]
                %400 = vst [vmem:[%s398] sm:%s387] %v399
                %v401 = vld [vmem:[%s397 + $0x8] sm:%s387]
                %402 = vst [vmem:[%s398 + $0x8] sm:%s387] %v401
                %v403 = vld [vmem:[%s397 + $0x10] sm:%s387]
                %404 = vst [vmem:[%s398 + $0x10] sm:%s387] %v403
                %v405 = vld [vmem:[%s397 + $0x18] sm:%s387]
                %406 = vst [vmem:[%s398 + $0x18] sm:%s387] %v405
                %v407 = vld [vmem:[%s397 + $0x20] sm:%s387]
                %408 = vst [vmem:[%s398 + $0x20] sm:%s387] %v407
                %v409 = vld [vmem:[%s397 + $0x28] sm:%s387]
                %410 = vst [vmem:[%s398 + $0x28] sm:%s387] %v409
                %v411 = vld [vmem:[%s397 + $0x30] sm:%s387]
                %412 = vst [vmem:[%s398 + $0x30] sm:%s387] %v411
                %s413 = sadd.s32 1, %s396
                %p414 = scmp.ge.s32.totalorder %s413, %s388
                %s415 = scalar_select %p414, 0, %s413
                %s416 = smul.u32 %s415, 56
                %s417 = smul.u32 %s415, 56
                %s418 = scalar_lea.vmem %s367, %s416 [#allocation2]
                %s419 = scalar_lea.vmem %s378, %s417
              $region53: #{tpu_custom_call.1} parent=47 // loop_footer
                %s393 = sadd.s32 %s391, 1
              $region54: #{tpu_custom_call.1} parent=47 // loop_footer_branch
                %390 = sbr.rel target = $region50
              $region55: #{tpu_custom_call.1} parent=47 // loop_exit
                _
              %s420 = sdiv.u32.pop %s374, 7
              %s421 = srem.u32.pop %s374, 7
              %s422 = smul.u32 %s420, 7
              %s423 = smul.u32 8, %s422
              %s424 = scalar_lea.vmem %s367, %s423 [#allocation2]
              %s425 = smul.u32 8, %s422
              %s426 = scalar_lea.vmem %s378, %s425
              // While loop
              $region56: #{tpu_custom_call.1} parent=47 // loop_pre_header
                _
              $region57: #{tpu_custom_call.1} parent=47 // loop_header
                %s428 = sphi 0, %s430
                %p429 = scmp.ge.s32.totalorder %s428, %s421
                %s433 = sphi 0, %s440
                %s434 = sphi %s424, %s443
                %s435 = sphi %s426, %s444
              $region58: #{tpu_custom_call.1} parent=47 // loop_header_branch
                %432 = sbr.rel (%p429) target = $region62
              $region59: #{tpu_custom_call.1} parent=47 // loop_body
                %v436 = vld [vmem:[%s434] sm:%s387]
                %437 = vst [vmem:[%s435] sm:%s387] %v436
                %s438 = sadd.s32 1, %s433
                %p439 = scmp.ge.s32.totalorder %s438, %s421
                %s440 = scalar_select %p439, 0, %s438
                %s441 = smul.u32 %s440, 8
                %s442 = smul.u32 %s440, 8
                %s443 = scalar_lea.vmem %s424, %s441 [#allocation2]
                %s444 = scalar_lea.vmem %s426, %s442
              $region60: #{tpu_custom_call.1} parent=47 // loop_footer
                %s430 = sadd.s32 %s428, 1
              $region61: #{tpu_custom_call.1} parent=47 // loop_footer_branch
                %427 = sbr.rel target = $region57
              $region62: #{tpu_custom_call.1} parent=47 // loop_exit
                _
            $region48: #{tpu_custom_call.1} parent=39 // pred_fallthru
              _
          $region40: #{tpu_custom_call.1} parent=35 // pred_fallthru
            _
          %506 = vnop
        $region36: #{tpu_custom_call.1} parent=31 // pred_fallthru
          _
      $region32: #{tpu_custom_call.1} parent=5 // pred_fallthru
        _
      %p507 = scmp.le.s32.totalorder 2, %s9
      // Predicated region
      $region85: #{tpu_custom_call.1} parent=5 // pred_check
        %p508 = pneg %p507
      $region86: #{tpu_custom_call.1} parent=5 // pred_check_branch
        %510 = sbr.rel (%p508) target = $region88
      $region87: #{tpu_custom_call.1} parent=5 // pred_region
        %s511 = ssub.s32 %s9, 2
        // Predicated region
        $region89: #{tpu_custom_call.1} parent=87 // pred_check
          %p512 = pneg %p106
        $region90: #{tpu_custom_call.1} parent=87 // pred_check_branch
          %514 = sbr.rel (%p512) target = $region92
        $region91: #{tpu_custom_call.1} parent=87 // pred_region
          %s515 = sand.u32 %s91, 1
          %s516 = sand.u32 %s91, 1
          %s517 = smul.addr %s516, 56
          %s518 = scalar_lea.vmem [#allocation2], %s517
        $region92: #{tpu_custom_call.1} parent=87 // pred_fallthru
          _
      $region88: #{tpu_custom_call.1} parent=5 // pred_fallthru
        _
    $region6: #{tpu_custom_call.1} parent=1 // loop_footer
      %s13 = sadd.s32 1, %s9
    $region7: #{tpu_custom_call.1} parent=1 // loop_footer_branch
      %8 = sbr.rel target = $region3
    $region8: #{tpu_custom_call.1} parent=1 // loop_exit
      _

</llo_original>
